<compile_context>
chip_gen: v7x
topology: tpu7x:2x2x1
jax: 0.10.0
libtpu: 0.0.40
codegen_flags: <defaults>
</compile_context>

<pallas_src>
import functools

import jax
import jax.numpy as jnp
from jax import lax
from jax.experimental import pallas as pl
from jax.experimental.pallas import tpu as pltpu

ALPHA_EMA = 0.9   # SimpleCoTTA alpha_ema
LR = 0.01         # SGD learning rate
STEPS = 1         # SimpleCoTTA steps

_LANE = 128
_SUBLANE = 8


def _round_up(n, m):
    return ((n + m - 1) // m) * m


def _cotta_kernel(x_ref, wst_in_ref, bst_in_ref, out_ref, wst_ref, bst_ref,
                  *, steps, b_real, c_real):
    """One grid step = full SimpleCoTTA adaptation on one mini-batch.

    x_ref      : [1, Bp, Dp]   current (zero-padded) mini-batch
    wst_in_ref : [2, Dp, Cp]   initial stacked (Wt_student, Wt_ema) (transposed)
    bst_in_ref : [2, Cp]       initial stacked (b_student, b_ema)
    out_ref    : [1, Bp, Cp]   student(x) with weights updated by this batch
    wst_ref    : [2, Dp, Cp]   carried params (constant block index -> resident
                               in VMEM across the whole grid; aliased with in)
    bst_ref    : [2, Cp]       carried biases (aliased with in)
    """
    i = pl.program_id(0)

    # Grid step 0: seed the carried parameter state from the inputs.
    @pl.when(i == 0)
    def _():
        wst_ref[...] = wst_in_ref[...]
        bst_ref[...] = bst_in_ref[...]

    x = x_ref[0]                      # [Bp, Dp]
    wt = wst_ref[0]                   # [Dp, Cp]  student  (W.T, zero-padded)
    wtema = wst_ref[1]                # [Dp, Cp]  EMA teacher
    bs = bst_ref[...]                 # [2, Cp]
    b = bs[0:1, :]                    # [1, Cp]
    bema = bs[1:2, :]                 # [1, Cp]

    bp = x.shape[0]
    two_over_n = jnp.float32(2.0 / (b_real * c_real))

    # MXU-native [M,K]x[K,N] forward contraction (no transposes materialized).
    dn_fwd = (((1,), (0,)), ((), ()))
    # grad wrt Wt: x^T @ g — contract the batch (sublane) axis of both.
    dn_grad = (((0,), (0,)), ((), ()))

    for _ in range(steps):   # `steps` is a small static constant -> unrolled
        # TODO(synk): for steps > ~4 switch to lax.fori_loop carrying
        # (wt, b, wtema, bema) to bound vreg live ranges.
        # student - teacher in ONE matmul: x @ (Wt - Wt_ema) + (b - b_ema)
        diff = lax.dot_general(x, wt - wtema, dn_fwd,
                               preferred_element_type=jnp.float32) + (b - bema)
        g = two_over_n * diff                              # dL/dpreds [Bp, Cp]
        if b_real < bp:
            # Padded batch rows of diff equal (b - b_ema) broadcast; mask them
            # so the bias gradient only sums the real rows.
            row_ok = lax.broadcasted_iota(jnp.int32, (bp, 1), 0) < b_real
            g = jnp.where(row_ok, g, 0.0)
        dwt = lax.dot_general(x, g, dn_grad,
                              preferred_element_type=jnp.float32)  # [Dp, Cp]
        db = jnp.sum(g, axis=0, keepdims=True)                     # [1, Cp]
        # SGD step
        wt = wt - LR * dwt
        b = b - LR * db
        # EMA teacher update
        wtema = ALPHA_EMA * wtema + (1.0 - ALPHA_EMA) * wt
        bema = ALPHA_EMA * bema + (1.0 - ALPHA_EMA) * b

    # final forward with the updated student
    out = lax.dot_general(x, wt, dn_fwd,
                          preferred_element_type=jnp.float32) + b

    out_ref[0] = out
    wst_ref[0] = wt
    wst_ref[1] = wtema
    bst_ref[...] = jnp.concatenate([b, bema], axis=0)   # single bias store


def _make_call(n_batches, Bp, Dp, Cp, steps, b_real, c_real):
    kern = functools.partial(_cotta_kernel, steps=steps,
                             b_real=b_real, c_real=c_real)

    x_spec = pl.BlockSpec((1, Bp, Dp), lambda i: (i, 0, 0))
    wst_spec = pl.BlockSpec((2, Dp, Cp), lambda i: (0, 0, 0))
    bst_spec = pl.BlockSpec((2, Cp), lambda i: (0, 0))
    out_spec = pl.BlockSpec((1, Bp, Cp), lambda i: (i, 0, 0))
    # NOTE: at realistic C/D on v7x (64 MiB VMEM), set
    # pipeline_mode=pl.Buffered(1) on the param specs (constant-index blocks
    # have nothing to double-buffer) and/or tile Cp over a 'parallel' grid
    # axis so both TensorCores share the work; also cast the forward-dot
    # operands to bf16 on v6e/v7x.  All irrelevant at this 128x128 padded
    # test size (latency-bound), so not enabled here.

    # 2 matmuls per step + 1 final forward, per mini-batch.
    flops = n_batches * (2 * steps + 1) * 2 * Bp * Cp * Dp
    bytes_accessed = 4 * (n_batches * Bp * (Dp + Cp)       # x in, out
                          + 2 * (2 * Dp * Cp + 2 * Cp))    # params in + out

    return pl.pallas_call(
        kern,
        grid=(n_batches,),
        in_specs=[x_spec, wst_spec, bst_spec],
        out_specs=(out_spec, wst_spec, bst_spec),
        out_shape=(
            jax.ShapeDtypeStruct((n_batches, Bp, Cp), jnp.float32),
            jax.ShapeDtypeStruct((2, Dp, Cp), jnp.float32),
            jax.ShapeDtypeStruct((2, Cp), jnp.float32),
        ),
        # Packed parameter buffers are updated in place (input -> output).
        input_output_aliases={1: 1, 2: 2},
        cost_estimate=pl.CostEstimate(flops=flops, transcendentals=0,
                                      bytes_accessed=bytes_accessed),
        compiler_params=pltpu.CompilerParams(
            dimension_semantics=("arbitrary",)),  # params carried across steps
    )


def pack_params(w, b, wema, bema):
    """(W [C,D], b, W_ema, b_ema) -> packed, padded, transposed buffers."""
    C, D = w.shape
    Dp = _round_up(D, _LANE)
    Cp = _round_up(C, _LANE)
    wst = (jnp.zeros((2, Dp, Cp), jnp.float32)
           .at[0, :D, :C].set(jnp.asarray(w, jnp.float32).T)
           .at[1, :D, :C].set(jnp.asarray(wema, jnp.float32).T))
    bst = (jnp.zeros((2, Cp), jnp.float32)
           .at[0, :C].set(jnp.ravel(jnp.asarray(b, jnp.float32)))
           .at[1, :C].set(jnp.ravel(jnp.asarray(bema, jnp.float32))))
    return wst, bst


def unpack_params(wst, bst, n_classes, n_features):
    w = wst[0, :n_features, :n_classes].T
    wema = wst[1, :n_features, :n_classes].T
    b = bst[0:1, :n_classes]
    bema = bst[1:2, :n_classes]
    return w, b, wema, bema


@functools.partial(jax.jit, static_argnames=("steps", "n_classes"),
                   donate_argnames=("wst", "bst"))
def simple_cotta_adapt(xs, wst, bst, *, steps, n_classes):
    """Adapt on a sequence of mini-batches with packed, resident parameters.

    xs  : [N, B, D]    N mini-batches, processed sequentially in ONE pallas_call
    wst : [2, Dp, Cp]  packed (Wt, Wt_ema)  (donated, updated in place)
    bst : [2, Cp]      packed (b, b_ema)    (donated, updated in place)
    Returns (outs [N, B, n_classes], wst_new, bst_new).
    """
    N, B, D = xs.shape
    _, Dp, Cp = wst.shape
    Bp = _round_up(B, _SUBLANE)
    xp = jnp.zeros((N, Bp, Dp), jnp.float32).at[:, :B, :D].set(xs)
    call = _make_call(N, Bp, Dp, Cp, steps, B, n_classes)
    out_p, wst_new, bst_new = call(xp, wst, bst)
    return out_p[:, :B, :n_classes], wst_new, bst_new


def simple_cotta_forward(x, w, b, wema, bema, steps=STEPS):
    """One-shot convenience API (packs / unpacks around the resident kernel)."""
    C, D = w.shape
    wst, bst = pack_params(w, b, wema, bema)
    out, wst_new, bst_new = simple_cotta_adapt(x[None], wst, bst,
                                               steps=steps, n_classes=C)
    w2, b2, we2, be2 = unpack_params(wst_new, bst_new, C, D)
    return out[0], w2, b2, we2, be2


def reference_forward(x, w, b, wema, bema, steps=STEPS):
    """Pure-JAX reference (same math as the PyTorch module)."""
    B = x.shape[0]
    C = w.shape[0]
    for _ in range(steps):
        preds = x @ w.T + b
        teacher = x @ wema.T + bema
        g = 2.0 * (preds - teacher) / (B * C)
        dW = g.T @ x
        db = jnp.sum(g, axis=0, keepdims=True)
        w = w - LR * dW
        b = b - LR * db
        wema = ALPHA_EMA * wema + (1.0 - ALPHA_EMA) * w
        bema = ALPHA_EMA * bema + (1.0 - ALPHA_EMA) * b
    out = x @ w.T + b
    return out, w, b, wema, bema


if __name__ == "__main__":
    B, D, C = 8, 32, 16   # batch, in_features, num_classes (CIFAR-like linear)

    key = jax.random.PRNGKey(0)
    kx, kw, kb, kpw, kpb, kxs = jax.random.split(key, 6)
    x = jax.random.normal(kx, (B, D), dtype=jnp.float32)
    w = jax.random.normal(kw, (C, D), dtype=jnp.float32) * 0.1
    b = jax.random.normal(kb, (1, C), dtype=jnp.float32) * 0.1

    def _check(got, want, tag):
        assert got.shape == want.shape, (tag, got.shape, want.shape)
        assert jnp.allclose(got, want, atol=2e-5, rtol=2e-5), f"mismatch: {tag}"

    # --- Case 1: spec-faithful — EMA teacher is a deepcopy of the student. ---
    outs = simple_cotta_forward(x, w, b, w, b, steps=1)
    jax.block_until_ready(outs)
    refs = reference_forward(x, w, b, w, b, steps=1)
    for got, want, tag in zip(outs, refs, ("out", "w", "b", "wema", "bema")):
        _check(got, want, f"case1/{tag}")

    # --- Case 2: drifted EMA, steps=2, ragged batch (B=5 < 8), three ---------
    # mini-batches adapted sequentially in ONE pallas_call with the packed
    # parameters resident in VMEM (exercises grad / SGD / EMA / row masking).
    B2, N = 5, 3
    xs = jax.random.normal(kxs, (N, B2, D), dtype=jnp.float32)
    wema2 = w + 0.05 * jax.random.normal(kpw, (C, D), dtype=jnp.float32)
    bema2 = b + 0.05 * jax.random.normal(kpb, (1, C), dtype=jnp.float32)

    wst, bst = pack_params(w, b, wema2, bema2)
    outs2, wst, bst = simple_cotta_adapt(xs, wst, bst, steps=2, n_classes=C)
    jax.block_until_ready((outs2, wst, bst))
    w2, b2, we2, be2 = unpack_params(wst, bst, C, D)

    rw, rb, rwe, rbe = w, b, wema2, bema2
    ref_outs = []
    for i in range(N):
        o, rw, rb, rwe, rbe = reference_forward(xs[i], rw, rb, rwe, rbe, steps=2)
        ref_outs.append(o)
    _check(outs2, jnp.stack(ref_outs), "case2/out")
    _check(w2, rw, "case2/w")
    _check(b2, rb, "case2/b")
    _check(we2, rwe, "case2/wema")
    _check(be2, rbe, "case2/bema")

    print("KERNEL_OK")
</pallas_src>

<mosaic_0001>
module attributes {stable_mosaic.version = 11 : i64} {
  func.func @_cotta_kernel(%arg0: i32, %arg1: memref<1x8x128xf32, #tpu.memory_space<vmem>>, %arg2: memref<2x128x128xf32, #tpu.memory_space<vmem>>, %arg3: memref<2x128xf32, #tpu.memory_space<vmem>>, %arg4: memref<1x8x128xf32, #tpu.memory_space<vmem>>, %arg5: memref<2x128x128xf32, #tpu.memory_space<vmem>>, %arg6: memref<2x128xf32, #tpu.memory_space<vmem>>) attributes {dimension_semantics = [#tpu.dimension_semantics<arbitrary>], iteration_bounds = array<i64: 1>, scalar_prefetch = 0 : i64, scratch_operands = 0 : i64, tpu.core_type = #tpu.core_type<tc>, window_params = [{transform_indices = @transform_0, window_bounds = array<i64: 1, 8, 128>}, {pipeline_mode = #tpu.pipeline_mode<synchronous>, transform_indices = @transform_1, window_bounds = array<i64: 2, 128, 128>}, {pipeline_mode = #tpu.pipeline_mode<synchronous>, transform_indices = @transform_2, window_bounds = array<i64: 2, 128>}, {transform_indices = @transform_3, window_bounds = array<i64: 1, 8, 128>}, {pipeline_mode = #tpu.pipeline_mode<synchronous>, transform_indices = @transform_4, window_bounds = array<i64: 2, 128, 128>}, {pipeline_mode = #tpu.pipeline_mode<synchronous>, transform_indices = @transform_5, window_bounds = array<i64: 2, 128>}]} {
    %c0_i32 = arith.constant 0 : i32
    %0 = arith.cmpi eq, %arg0, %c0_i32 : i32
    %1 = arith.extui %0 : i1 to i32
    %c0_i32_0 = arith.constant 0 : i32
    %2 = arith.cmpi ne, %1, %c0_i32_0 : i32
    scf.if %2 {
      %c0_31 = arith.constant 0 : index
      %c0_32 = arith.constant 0 : index
      %c0_33 = arith.constant 0 : index
      %52 = vector.load %arg2[%c0_31, %c0_32, %c0_33] : memref<2x128x128xf32, #tpu.memory_space<vmem>>, vector<2x128x128xf32>
      %c0_34 = arith.constant 0 : index
      %c0_35 = arith.constant 0 : index
      %c0_36 = arith.constant 0 : index
      %53 = vector.load %arg5[%c0_34, %c0_35, %c0_36] : memref<2x128x128xf32, #tpu.memory_space<vmem>>, vector<2x128x128xf32>
      tpu.vector_store %arg5[%c0_34, %c0_35, %c0_36], %52 {strides = array<i32>} : memref<2x128x128xf32, #tpu.memory_space<vmem>>, vector<2x128x128xf32>,
      %c0_37 = arith.constant 0 : index
      %c0_38 = arith.constant 0 : index
      %54 = vector.load %arg3[%c0_37, %c0_38] : memref<2x128xf32, #tpu.memory_space<vmem>>, vector<2x128xf32>
      %c0_39 = arith.constant 0 : index
      %c0_40 = arith.constant 0 : index
      %55 = vector.load %arg6[%c0_39, %c0_40] : memref<2x128xf32, #tpu.memory_space<vmem>>, vector<2x128xf32>
      tpu.vector_store %arg6[%c0_39, %c0_40], %54 {strides = array<i32>} : memref<2x128xf32, #tpu.memory_space<vmem>>, vector<2x128xf32>,
    } else {
    }
    %c0 = arith.constant 0 : index
    %c0_1 = arith.constant 0 : index
    %c0_2 = arith.constant 0 : index
    %3 = vector.load %arg1[%c0, %c0_1, %c0_2] : memref<1x8x128xf32, #tpu.memory_space<vmem>>, vector<1x8x128xf32>
    %4 = vector.shape_cast %3 : vector<1x8x128xf32> to vector<8x128xf32>
    %c0_3 = arith.constant 0 : index
    %c0_4 = arith.constant 0 : index
    %c0_5 = arith.constant 0 : index
    %5 = vector.load %arg5[%c0_3, %c0_4, %c0_5] : memref<2x128x128xf32, #tpu.memory_space<vmem>>, vector<1x128x128xf32>
    %6 = vector.shape_cast %5 : vector<1x128x128xf32> to vector<128x128xf32>
    %c1 = arith.constant 1 : index
    %c0_6 = arith.constant 0 : index
    %c0_7 = arith.constant 0 : index
    %7 = vector.load %arg5[%c1, %c0_6, %c0_7] : memref<2x128x128xf32, #tpu.memory_space<vmem>>, vector<1x128x128xf32>
    %8 = vector.shape_cast %7 : vector<1x128x128xf32> to vector<128x128xf32>
    %c0_8 = arith.constant 0 : index
    %c0_9 = arith.constant 0 : index
    %9 = vector.load %arg6[%c0_8, %c0_9] : memref<2x128xf32, #tpu.memory_space<vmem>>, vector<2x128xf32>
    %10 = vector.extract_strided_slice %9 {offsets = [0, 0], sizes = [1, 128], strides = [1, 1]} : vector<2x128xf32> to vector<1x128xf32>
    %11 = vector.extract_strided_slice %9 {offsets = [1, 0], sizes = [1, 128], strides = [1, 1]} : vector<2x128xf32> to vector<1x128xf32>
    %12 = arith.subf %6, %8 : vector<128x128xf32>
    %cst = arith.constant dense<0.000000e+00> : vector<8x128xf32>
    %13 = tpu.matmul %4, %12, %cst {dimension_numbers = #tpu.dot_dimension_numbers<[1], [0], [0], [1], [0, 0, 1, 1], [], []>} : vector<8x128xf32>, vector<128x128xf32>, vector<8x128xf32> -> vector<8x128xf32>
    %14 = arith.subf %10, %11 : vector<1x128xf32>
    %15 = vector.broadcast %14 : vector<1x128xf32> to vector<8x128xf32>
    %16 = arith.addf %13, %15 : vector<8x128xf32>
    %cst_10 = arith.constant 1.562500e-02 : f32
    %17 = vector.broadcast %cst_10 : f32 to vector<8x128xf32>
    %18 = arith.mulf %17, %16 : vector<8x128xf32>
    %cst_11 = arith.constant dense<0.000000e+00> : vector<128x128xf32>
    %19 = tpu.matmul %4, %18, %cst_11 {dimension_numbers = #tpu.dot_dimension_numbers<[0], [0], [1], [1], [0, 1, 1, 1], [], []>} : vector<8x128xf32>, vector<8x128xf32>, vector<128x128xf32> -> vector<128x128xf32>
    %cst_12 = arith.constant dense<0.000000e+00> : vector<128xf32>
    %20 = vector.multi_reduction <add>, %18, %cst_12 [0] : vector<8x128xf32> to vector<128xf32>
    %21 = vector.shape_cast %20 : vector<128xf32> to vector<1x128xf32>
    %cst_13 = arith.constant 0.00999999977 : f32
    %22 = vector.broadcast %cst_13 : f32 to vector<128x128xf32>
    %23 = arith.mulf %22, %19 : vector<128x128xf32>
    %24 = arith.subf %6, %23 : vector<128x128xf32>
    %cst_14 = arith.constant 0.00999999977 : f32
    %25 = vector.broadcast %cst_14 : f32 to vector<1x128xf32>
    %26 = arith.mulf %25, %21 : vector<1x128xf32>
    %27 = arith.subf %10, %26 : vector<1x128xf32>
    %cst_15 = arith.constant 0.899999976 : f32
    %28 = vector.broadcast %cst_15 : f32 to vector<128x128xf32>
    %29 = arith.mulf %28, %8 : vector<128x128xf32>
    %cst_16 = arith.constant 1.000000e-01 : f32
    %30 = vector.broadcast %cst_16 : f32 to vector<128x128xf32>
    %31 = arith.mulf %30, %24 : vector<128x128xf32>
    %32 = arith.addf %29, %31 : vector<128x128xf32>
    %cst_17 = arith.constant 0.899999976 : f32
    %33 = vector.broadcast %cst_17 : f32 to vector<1x128xf32>
    %34 = arith.mulf %33, %11 : vector<1x128xf32>
    %cst_18 = arith.constant 1.000000e-01 : f32
    %35 = vector.broadcast %cst_18 : f32 to vector<1x128xf32>
    %36 = arith.mulf %35, %27 : vector<1x128xf32>
    %37 = arith.addf %34, %36 : vector<1x128xf32>
    %cst_19 = arith.constant dense<0.000000e+00> : vector<8x128xf32>
    %38 = tpu.matmul %4, %24, %cst_19 {dimension_numbers = #tpu.dot_dimension_numbers<[1], [0], [0], [1], [0, 0, 1, 1], [], []>} : vector<8x128xf32>, vector<128x128xf32>, vector<8x128xf32> -> vector<8x128xf32>
    %39 = vector.broadcast %27 : vector<1x128xf32> to vector<8x128xf32>
    %40 = arith.addf %38, %39 : vector<8x128xf32>
    %c0_20 = arith.constant 0 : index
    %c0_21 = arith.constant 0 : index
    %c0_22 = arith.constant 0 : index
    %41 = vector.load %arg4[%c0_20, %c0_21, %c0_22] : memref<1x8x128xf32, #tpu.memory_space<vmem>>, vector<1x8x128xf32>
    %42 = vector.shape_cast %41 : vector<1x8x128xf32> to vector<8x128xf32>
    %43 = vector.shape_cast %40 : vector<8x128xf32> to vector<1x8x128xf32>
    tpu.vector_store %arg4[%c0_20, %c0_21, %c0_22], %43 {strides = array<i32>} : memref<1x8x128xf32, #tpu.memory_space<vmem>>, vector<1x8x128xf32>,
    %c0_23 = arith.constant 0 : index
    %c0_24 = arith.constant 0 : index
    %c0_25 = arith.constant 0 : index
    %44 = vector.load %arg5[%c0_23, %c0_24, %c0_25] : memref<2x128x128xf32, #tpu.memory_space<vmem>>, vector<1x128x128xf32>
    %45 = vector.shape_cast %44 : vector<1x128x128xf32> to vector<128x128xf32>
    %46 = vector.shape_cast %24 : vector<128x128xf32> to vector<1x128x128xf32>
    tpu.vector_store %arg5[%c0_23, %c0_24, %c0_25], %46 {strides = array<i32>} : memref<2x128x128xf32, #tpu.memory_space<vmem>>, vector<1x128x128xf32>,
    %c1_26 = arith.constant 1 : index
    %c0_27 = arith.constant 0 : index
    %c0_28 = arith.constant 0 : index
    %47 = vector.load %arg5[%c1_26, %c0_27, %c0_28] : memref<2x128x128xf32, #tpu.memory_space<vmem>>, vector<1x128x128xf32>
    %48 = vector.shape_cast %47 : vector<1x128x128xf32> to vector<128x128xf32>
    %49 = vector.shape_cast %32 : vector<128x128xf32> to vector<1x128x128xf32>
    tpu.vector_store %arg5[%c1_26, %c0_27, %c0_28], %49 {strides = array<i32>} : memref<2x128x128xf32, #tpu.memory_space<vmem>>, vector<1x128x128xf32>,
    %50 = tpu.concatenate %27, %37 in 0 : vector<1x128xf32>, vector<1x128xf32> -> vector<2x128xf32>
    %c0_29 = arith.constant 0 : index
    %c0_30 = arith.constant 0 : index
    %51 = vector.load %arg6[%c0_29, %c0_30] : memref<2x128xf32, #tpu.memory_space<vmem>>, vector<2x128xf32>
    tpu.vector_store %arg6[%c0_29, %c0_30], %50 {strides = array<i32>} : memref<2x128xf32, #tpu.memory_space<vmem>>, vector<2x128xf32>,
    return
  }
  func.func @transform_0(%arg0: i32) -> (i32, i32, i32) {
    %c0_i32 = arith.constant 0 : i32
    %c0_i32_0 = arith.constant 0 : i32
    %c0_i32_1 = arith.constant 0 : i32
    return %arg0, %c0_i32, %c0_i32_0 : i32, i32, i32
  }
  func.func @transform_1(%arg0: i32) -> (i32, i32, i32) {
    %c0_i32 = arith.constant 0 : i32
    %c0_i32_0 = arith.constant 0 : i32
    %c0_i32_1 = arith.constant 0 : i32
    %c0_i32_2 = arith.constant 0 : i32
    return %c0_i32, %c0_i32_0, %c0_i32_1 : i32, i32, i32
  }
  func.func @transform_2(%arg0: i32) -> (i32, i32) {
    %c0_i32 = arith.constant 0 : i32
    %c0_i32_0 = arith.constant 0 : i32
    %c0_i32_1 = arith.constant 0 : i32
    return %c0_i32, %c0_i32_0 : i32, i32
  }
  func.func @transform_3(%arg0: i32) -> (i32, i32, i32) {
    %c0_i32 = arith.constant 0 : i32
    %c0_i32_0 = arith.constant 0 : i32
    %c0_i32_1 = arith.constant 0 : i32
    return %arg0, %c0_i32, %c0_i32_0 : i32, i32, i32
  }
  func.func @transform_4(%arg0: i32) -> (i32, i32, i32) {
    %c0_i32 = arith.constant 0 : i32
    %c0_i32_0 = arith.constant 0 : i32
    %c0_i32_1 = arith.constant 0 : i32
    %c0_i32_2 = arith.constant 0 : i32
    return %c0_i32, %c0_i32_0, %c0_i32_1 : i32, i32, i32
  }
  func.func @transform_5(%arg0: i32) -> (i32, i32) {
    %c0_i32 = arith.constant 0 : i32
    %c0_i32_0 = arith.constant 0 : i32
    %c0_i32_1 = arith.constant 0 : i32
    return %c0_i32, %c0_i32_0 : i32, i32
  }
}

</mosaic_0001>

<llo_original>
// kernel: simple_cotta_adapt.1
$region0: #{simple_cotta_adapt.1}
  #allocation0 [shape = 'u32[]', space=smem, size = 0x4, offset = 0x4, fixed_abs, tag = 'smem constant byte address 0x4 - core index']
  #allocation1 [shape = 'u32[144,128]{1,0:T(1,128)}', space=vmem, size = 0x12000, scoped, tag = 'internal scratch']
  %s0 = inlined_call_operand.vmem [shape: f32[1,8,128], index: 0, kind: input, shape index: {}]
  %s1 = inlined_call_operand.hbm [shape: f32[2,128,128], index: 1, kind: input, shape index: {}, may-alias: {1,4}]
  %s2 = inlined_call_operand.vmem [shape: f32[2,128], index: 2, kind: input, shape index: {}, may-alias: {2,5}]
  %s3 = inlined_call_operand.hbm [shape: f32[1,8,128], index: 3, kind: output, shape index: {0}]
  %s4 = inlined_call_operand.hbm [shape: f32[2,128,128], index: 4, kind: output, shape index: {1}, may-alias: {1,4}]
  %s5 = inlined_call_operand.vmem [shape: f32[2,128], index: 5, kind: output, shape index: {2}, may-alias: {2,5}]
  %6 = xla_tuple %s3, %s4, %s5
  %s7 = sld [smem:[#allocation0]]
  $region46: #{simple_cotta_adapt.1} parent=0
    _
  %s9 = ssub.s32 1, %s7
  %s10 = scalar_select 0, %s9, %s7
  $region1: #{simple_cotta_adapt.1} parent=0
    #allocation2 [shape = 'u8[131072]{0}', space=vmem, size = 0x20000, scoped, tag = 'input window, operand 1, single buffered']
    #allocation3 [shape = 's32[1]{0}', space=sflag, size = 0x4, scoped, tag = 'scoped memory for simple_cotta_adapt.1']
    #allocation4 [shape = 's32[1]{0}', space=sflag, size = 0x4, scoped, tag = 'scoped memory for simple_cotta_adapt.1']
    #allocation5 [shape = 'u8[4096]{0}', space=vmem, size = 0x1000, scoped, tag = 'output window, operand 0, single buffered']
    #allocation6 [shape = 'u8[131072]{0}', space=vmem, size = 0x20000, scoped, tag = 'output window, operand 1, single buffered']
    #allocation7 [shape = 's32[1]{0}', space=sflag, size = 0x4, scoped, tag = 'scoped memory for simple_cotta_adapt.1']
    %11 = vsyncpa [#allocation3], 0
    %12 = vsyncpa [#allocation4], 0
    %13 = vsyncpa [#allocation7], 0
    // Predicated region
    $region2: #{simple_cotta_adapt.1} parent=1 // pred_check
      _
    $region3: #{simple_cotta_adapt.1} parent=1 // pred_check_branch
      %15 = sbr.rel (0) target = $region5
    $region4: #{simple_cotta_adapt.1} parent=1 // pred_region
      _
    $region5: #{simple_cotta_adapt.1} parent=1 // pred_fallthru
      _
    // Predicated region
    $region6: #{simple_cotta_adapt.1} parent=1 // pred_check
      _
    $region7: #{simple_cotta_adapt.1} parent=1 // pred_check_branch
      %17 = sbr.rel (0) target = $region9
    $region8: #{simple_cotta_adapt.1} parent=1 // pred_region
      %s19 = ssub.s32 4096, 4096
      %20 = vsyncadd [#allocation3], %s19
      %s21 = sshll.u32 [#allocation2], 4
      %s22 = int_to_ptr.vmem [resolvable:$true] %s21
      %27 = dma.hbm_to_vmem [thread:$0]  %s1, 4096, %s22, [#allocation3], 128, 128, 8
    $region9: #{simple_cotta_adapt.1} parent=1 // pred_fallthru
      _
    // Predicated region
    $region10: #{simple_cotta_adapt.1} parent=1 // pred_check
      _
    $region11: #{simple_cotta_adapt.1} parent=1 // pred_check_branch
      %29 = sbr.rel (0) target = $region13
    $region12: #{simple_cotta_adapt.1} parent=1 // pred_region
      _
    $region13: #{simple_cotta_adapt.1} parent=1 // pred_fallthru
      _
    // Predicated region
    $region14: #{simple_cotta_adapt.1} parent=1 // pred_check
      _
    $region15: #{simple_cotta_adapt.1} parent=1 // pred_check_branch
      %31 = sbr.rel (0) target = $region17
    $region16: #{simple_cotta_adapt.1} parent=1 // pred_region
      %32 = dma.done [#allocation3], 4096
    $region17: #{simple_cotta_adapt.1} parent=1 // pred_fallthru
      _
    %p33 = scmp.eq.s32.totalorder 0, 0
    // Predicated region
    $region18: #{simple_cotta_adapt.1} parent=1 // pred_check
      %p34 = pneg %p33
    $region19: #{simple_cotta_adapt.1} parent=1 // pred_check_branch
      %36 = sbr.rel (%p34) target = $region21
    $region20: #{simple_cotta_adapt.1} parent=1 // pred_region
      %v37 = vld [vmem:[#allocation2] sm:$0xff]
      %v38 = vld [vmem:[#allocation2 + $0x8] sm:$0xff]
      %v39 = vld [vmem:[#allocation2 + $0x10] sm:$0xff]
      %v40 = vld [vmem:[#allocation2 + $0x18] sm:$0xff]
      %v41 = vld [vmem:[#allocation2 + $0x20] sm:$0xff]
      %v42 = vld [vmem:[#allocation2 + $0x28] sm:$0xff]
      %v43 = vld [vmem:[#allocation2 + $0x30] sm:$0xff]
      %v44 = vld [vmem:[#allocation2 + $0x38] sm:$0xff]
      %v45 = vld [vmem:[#allocation2 + $0x40] sm:$0xff]
      %v46 = vld [vmem:[#allocation2 + $0x48] sm:$0xff]
      %v47 = vld [vmem:[#allocation2 + $0x50] sm:$0xff]
      %v48 = vld [vmem:[#allocation2 + $0x58] sm:$0xff]
      %v49 = vld [vmem:[#allocation2 + $0x60] sm:$0xff]
      %v50 = vld [vmem:[#allocation2 + $0x68] sm:$0xff]
      %v51 = vld [vmem:[#allocation2 + $0x70] sm:$0xff]
      %v52 = vld [vmem:[#allocation2 + $0x78] sm:$0xff]
      %v53 = vld [vmem:[#allocation2 + $0x80] sm:$0xff]
      %v54 = vld [vmem:[#allocation2 + $0x88] sm:$0xff]
      %v55 = vld [vmem:[#allocation2 + $0x90] sm:$0xff]
      %v56 = vld [vmem:[#allocation2 + $0x98] sm:$0xff]
      %v57 = vld [vmem:[#allocation2 + $0xa0] sm:$0xff]
      %v58 = vld [vmem:[#allocation2 + $0xa8] sm:$0xff]
      %v59 = vld [vmem:[#allocation2 + $0xb0] sm:$0xff]
      %v60 = vld [vmem:[#allocation2 + $0xb8] sm:$0xff]
      %v61 = vld [vmem:[#allocation2 + $0xc0] sm:$0xff]
      %v62 = vld [vmem:[#allocation2 + $0xc8] sm:$0xff]
      %v63 = vld [vmem:[#allocation2 + $0xd0] sm:$0xff]
      %v64 = vld [vmem:[#allocation2 + $0xd8] sm:$0xff]
      %v65 = vld [vmem:[#allocation2 + $0xe0] sm:$0xff]
      %v66 = vld [vmem:[#allocation2 + $0xe8] sm:$0xff]
      %v67 = vld [vmem:[#allocation2 + $0xf0] sm:$0xff]
      %v68 = vld [vmem:[#allocation2 + $0xf8] sm:$0xff]
      %69 = vst [vmem:[#allocation6] sm:$0xff] %v37
      %70 = vst [vmem:[#allocation6 + $0x8] sm:$0xff] %v38
      %71 = vst [vmem:[#allocation6 + $0x10] sm:$0xff] %v39
      %72 = vst [vmem:[#allocation6 + $0x18] sm:$0xff] %v40
      %73 = vst [vmem:[#allocation6 + $0x20] sm:$0xff] %v41
      %74 = vst [vmem:[#allocation6 + $0x28] sm:$0xff] %v42
      %75 = vst [vmem:[#allocation6 + $0x30] sm:$0xff] %v43
      %76 = vst [vmem:[#allocation6 + $0x38] sm:$0xff] %v44
      %77 = vst [vmem:[#allocation6 + $0x40] sm:$0xff] %v45
      %78 = vst [vmem:[#allocation6 + $0x48] sm:$0xff] %v46
      %79 = vst [vmem:[#allocation6 + $0x50] sm:$0xff] %v47
      %80 = vst [vmem:[#allocation6 + $0x58] sm:$0xff] %v48
      %81 = vst [vmem:[#allocation6 + $0x60] sm:$0xff] %v49
      %82 = vst [vmem:[#allocation6 + $0x68] sm:$0xff] %v50
      %83 = vst [vmem:[#allocation6 + $0x70] sm:$0xff] %v51
      %84 = vst [vmem:[#allocation6 + $0x78] sm:$0xff] %v52
      %85 = vst [vmem:[#allocation6 + $0x80] sm:$0xff] %v53
      %86 = vst [vmem:[#allocation6 + $0x88] sm:$0xff] %v54
      %87 = vst [vmem:[#allocation6 + $0x90] sm:$0xff] %v55
      %88 = vst [vmem:[#allocation6 + $0x98] sm:$0xff] %v56
      %89 = vst [vmem:[#allocation6 + $0xa0] sm:$0xff] %v57
      %90 = vst [vmem:[#allocation6 + $0xa8] sm:$0xff] %v58
      %91 = vst [vmem:[#allocation6 + $0xb0] sm:$0xff] %v59
      %92 = vst [vmem:[#allocation6 + $0xb8] sm:$0xff] %v60
      %93 = vst [vmem:[#allocation6 + $0xc0] sm:$0xff] %v61
      %94 = vst [vmem:[#allocation6 + $0xc8] sm:$0xff] %v62
      %95 = vst [vmem:[#allocation6 + $0xd0] sm:$0xff] %v63
      %96 = vst [vmem:[#allocation6 + $0xd8] sm:$0xff] %v64
      %97 = vst [vmem:[#allocation6 + $0xe0] sm:$0xff] %v65
      %98 = vst [vmem:[#allocation6 + $0xe8] sm:$0xff] %v66
      %99 = vst [vmem:[#allocation6 + $0xf0] sm:$0xff] %v67
      %100 = vst [vmem:[#allocation6 + $0xf8] sm:$0xff] %v68
      %v101 = vld [vmem:[%s2] sm:$0x3]
      %102 = vst [vmem:[%s5] sm:$0x3] %v101
    $region21: #{simple_cotta_adapt.1} parent=1 // pred_fallthru
      _
    %v103 = vld [vmem:[%s0] sm:$0xff]
    %v104 = vld [vmem:[#allocation6] sm:$0xff]
    %v105 = vld [vmem:[#allocation6 + $0x8] sm:$0xff]
    %v106 = vld [vmem:[#allocation6 + $0x10] sm:$0xff]
    %v107 = vld [vmem:[#allocation6 + $0x18] sm:$0xff]
    %v108 = vld [vmem:[#allocation6 + $0x20] sm:$0xff]
    %v109 = vld [vmem:[#allocation6 + $0x28] sm:$0xff]
    %v110 = vld [vmem:[#allocation6 + $0x30] sm:$0xff]
    %v111 = vld [vmem:[#allocation6 + $0x38] sm:$0xff]
    %v112 = vld [vmem:[#allocation6 + $0x40] sm:$0xff]
    %v113 = vld [vmem:[#allocation6 + $0x48] sm:$0xff]
    %v114 = vld [vmem:[#allocation6 + $0x50] sm:$0xff]
    %v115 = vld [vmem:[#allocation6 + $0x58] sm:$0xff]
    %v116 = vld [vmem:[#allocation6 + $0x60] sm:$0xff]
    %v117 = vld [vmem:[#allocation6 + $0x68] sm:$0xff]
    %v118 = vld [vmem:[#allocation6 + $0x70] sm:$0xff]
    %v119 = vld [vmem:[#allocation6 + $0x78] sm:$0xff]
    %s120 = scalar_lea.vmem [#allocation6], 128
    %v121 = vld [vmem:[%s120] sm:$0xff]
    %v122 = vld [vmem:[%s120 + $0x8] sm:$0xff]
    %v123 = vld [vmem:[%s120 + $0x10] sm:$0xff]
    %v124 = vld [vmem:[%s120 + $0x18] sm:$0xff]
    %v125 = vld [vmem:[%s120 + $0x20] sm:$0xff]
    %v126 = vld [vmem:[%s120 + $0x28] sm:$0xff]
    %v127 = vld [vmem:[%s120 + $0x30] sm:$0xff]
    %v128 = vld [vmem:[%s120 + $0x38] sm:$0xff]
    %v129 = vld [vmem:[%s120 + $0x40] sm:$0xff]
    %v130 = vld [vmem:[%s120 + $0x48] sm:$0xff]
    %v131 = vld [vmem:[%s120 + $0x50] sm:$0xff]
    %v132 = vld [vmem:[%s120 + $0x58] sm:$0xff]
    %v133 = vld [vmem:[%s120 + $0x60] sm:$0xff]
    %v134 = vld [vmem:[%s120 + $0x68] sm:$0xff]
    %v135 = vld [vmem:[%s120 + $0x70] sm:$0xff]
    %v136 = vld [vmem:[%s120 + $0x78] sm:$0xff]
    %v137 = vld [vmem:[%s5] sm:$0x3]
    %v138 = vsub.f32 %v104, %v121
    %v139 = vsub.f32 %v105, %v122
    %v140 = vsub.f32 %v106, %v123
    %v141 = vsub.f32 %v107, %v124
    %v142 = vsub.f32 %v108, %v125
    %v143 = vsub.f32 %v109, %v126
    %v144 = vsub.f32 %v110, %v127
    %v145 = vsub.f32 %v111, %v128
    %v146 = vsub.f32 %v112, %v129
    %v147 = vsub.f32 %v113, %v130
    %v148 = vsub.f32 %v114, %v131
    %v149 = vsub.f32 %v115, %v132
    %v150 = vsub.f32 %v116, %v133
    %v151 = vsub.f32 %v117, %v134
    %v152 = vsub.f32 %v118, %v135
    %v153 = vsub.f32 %v119, %v136
    %v155 = vrot.slane %v137, 1
    %v157 = vsub.f32 %v137, %v155
    %v158 = vlaneseq
    %v159 = vshrl.u32 %v158, 7
    %v160 = vsub.s32 0, %v159
    %v161 = vrot.slane %v157, %v160
    %162 = vmatprep.subr.mxu0 0.0
    %163 = vmatpush1.msra.mxu0 %v138
    %164 = vmatprep.subr.mxu0 0.0
    %165 = vmatpush1.msra.mxu0 %v139
    %166 = vmatprep.subr.mxu0 0.0
    %167 = vmatpush1.msra.mxu0 %v140
    %168 = vmatprep.subr.mxu0 0.0
    %169 = vmatpush1.msra.mxu0 %v141
    %170 = vmatprep.subr.mxu0 0.0
    %171 = vmatpush1.msra.mxu0 %v142
    %172 = vmatprep.subr.mxu0 0.0
    %173 = vmatpush1.msra.mxu0 %v143
    %174 = vmatprep.subr.mxu0 0.0
    %175 = vmatpush1.msra.mxu0 %v144
    %176 = vmatprep.subr.mxu0 0.0
    %177 = vmatpush1.msra.mxu0 %v145
    %178 = vmatprep.subr.mxu0 0.0
    %179 = vmatpush1.msra.mxu0 %v146
    %180 = vmatprep.subr.mxu0 0.0
    %181 = vmatpush1.msra.mxu0 %v147
    %182 = vmatprep.subr.mxu0 0.0
    %183 = vmatpush1.msra.mxu0 %v148
    %184 = vmatprep.subr.mxu0 0.0
    %185 = vmatpush1.msra.mxu0 %v149
    %186 = vmatprep.subr.mxu0 0.0
    %187 = vmatpush1.msra.mxu0 %v150
    %188 = vmatprep.subr.mxu0 0.0
    %189 = vmatpush1.msra.mxu0 %v151
    %190 = vmatprep.subr.mxu0 0.0
    %191 = vmatpush1.msra.mxu0 %v152
    %192 = vmatprep.subr.mxu0 0.0
    %193 = vmatpush1.msra.mxu0 %v153
    %194 = vmatprep.subr.mxu0 0.0
    %195 = vmatpush1.msra.mxu0 0.0
    %196 = vmatprep.subr.mxu0 0.0
    %197 = vmatpush1.msra.mxu0 0.0
    %198 = vmatprep.subr.mxu0 0.0
    %199 = vmatpush1.msra.mxu0 0.0
    %200 = vmatprep.subr.mxu0 0.0
    %201 = vmatpush1.msra.mxu0 0.0
    %202 = vmatprep.subr.mxu0 0.0
    %203 = vmatpush1.msra.mxu0 0.0
    %204 = vmatprep.subr.mxu0 0.0
    %205 = vmatpush1.msra.mxu0 0.0
    %206 = vmatprep.subr.mxu0 0.0
    %207 = vmatpush1.msra.mxu0 0.0
    %208 = vmatprep.subr.mxu0 0.0
    %209 = vmatpush1.msra.mxu0 0.0
    %210 = vmatprep.subr.mxu0 0.0
    %211 = vmatpush1.msra.mxu0 0.0
    %212 = vmatprep.subr.mxu0 0.0
    %213 = vmatpush1.msra.mxu0 0.0
    %214 = vmatprep.subr.mxu0 0.0
    %215 = vmatpush1.msra.mxu0 0.0
    %216 = vmatprep.subr.mxu0 0.0
    %217 = vmatpush1.msra.mxu0 0.0
    %218 = vmatprep.subr.mxu0 0.0
    %219 = vmatpush1.msra.mxu0 0.0
    %220 = vmatprep.subr.mxu0 0.0
    %221 = vmatpush1.msra.mxu0 0.0
    %222 = vmatprep.subr.mxu0 0.0
    %223 = vmatpush1.msra.mxu0 0.0
    %224 = vmatprep.subr.mxu0 0.0
    %225 = vmatpush1.msra.mxu0 0.0
    %226 = vmatprep.mubr.f32.mxu0 0.0
    %227 = vmatmul.mubr.f32.gmra.mrb[0].mxu0 %v103
    %v228 = vpop.f32.mrb[0].mxu0
    %v229 = vadd.f32 %v161, %v228
    %v230 = vpop.f32.mrb[0].mxu0
    %231 = vdwg.mxu0
    %v232 = vmul.f32 %v229, 0.015625
    %233 = vxpose.xlu0.b32.start [1/16] %v103, 128
    %234 = vxpose.xlu0.b32.cont [2/16] 0.0, 128
    %235 = vxpose.xlu0.b32.cont [3/16] 0.0, 128
    %236 = vxpose.xlu0.b32.cont [4/16] 0.0, 128
    %237 = vxpose.xlu0.b32.cont [5/16] 0.0, 128
    %238 = vxpose.xlu0.b32.cont [6/16] 0.0, 128
    %239 = vxpose.xlu0.b32.cont [7/16] 0.0, 128
    %240 = vxpose.xlu0.b32.cont [8/16] 0.0, 128
    %241 = vxpose.xlu0.b32.cont [9/16] 0.0, 128
    %242 = vxpose.xlu0.b32.cont [10/16] 0.0, 128
    %243 = vxpose.xlu0.b32.cont [11/16] 0.0, 128
    %244 = vxpose.xlu0.b32.cont [12/16] 0.0, 128
    %245 = vxpose.xlu0.b32.cont [13/16] 0.0, 128
    %246 = vxpose.xlu0.b32.cont [14/16] 0.0, 128
    %247 = vxpose.xlu0.b32.cont [15/16] 0.0, 128
    %248 = vxpose.xlu0.b32.end [16/16] 0.0, 128
    %v249 = vpop.trf.xlu0
    %v250 = vpop.trf.xlu0
    %v251 = vpop.trf.xlu0
    %v252 = vpop.trf.xlu0
    %v253 = vpop.trf.xlu0
    %v254 = vpop.trf.xlu0
    %v255 = vpop.trf.xlu0
    %v256 = vpop.trf.xlu0
    %v257 = vpop.trf.xlu0
    %v258 = vpop.trf.xlu0
    %v259 = vpop.trf.xlu0
    %v260 = vpop.trf.xlu0
    %v261 = vpop.trf.xlu0
    %v262 = vpop.trf.xlu0
    %v263 = vpop.trf.xlu0
    %v264 = vpop.trf.xlu0
    %vm265 = vcmask 64512
    %v267 = vsel %vm265, %v249, 0
    %v270 = vsel %vm265, %v250, 0
    %v273 = vsel %vm265, %v251, 0
    %v276 = vsel %vm265, %v252, 0
    %v279 = vsel %vm265, %v253, 0
    %v282 = vsel %vm265, %v254, 0
    %v285 = vsel %vm265, %v255, 0
    %v288 = vsel %vm265, %v256, 0
    %v291 = vsel %vm265, %v257, 0
    %v294 = vsel %vm265, %v258, 0
    %v297 = vsel %vm265, %v259, 0
    %v300 = vsel %vm265, %v260, 0
    %v303 = vsel %vm265, %v261, 0
    %v306 = vsel %vm265, %v262, 0
    %v309 = vsel %vm265, %v263, 0
    %v312 = vsel %vm265, %v264, 0
    %314 = vmatprep.subr.mxu0 0.0
    %315 = vmatpush1.msra.mxu0 %v232
    %316 = vmatprep.subr.mxu0 0.0
    %317 = vmatpush1.msra.mxu0 0.0
    %318 = vmatprep.subr.mxu0 0.0
    %319 = vmatpush1.msra.mxu0 0.0
    %320 = vmatprep.subr.mxu0 0.0
    %321 = vmatpush1.msra.mxu0 0.0
    %322 = vmatprep.subr.mxu0 0.0
    %323 = vmatpush1.msra.mxu0 0.0
    %324 = vmatprep.subr.mxu0 0.0
    %325 = vmatpush1.msra.mxu0 0.0
    %326 = vmatprep.subr.mxu0 0.0
    %327 = vmatpush1.msra.mxu0 0.0
    %328 = vmatprep.subr.mxu0 0.0
    %329 = vmatpush1.msra.mxu0 0.0
    %330 = vmatprep.subr.mxu0 0.0
    %331 = vmatpush1.msra.mxu0 0.0
    %332 = vmatprep.subr.mxu0 0.0
    %333 = vmatpush1.msra.mxu0 0.0
    %334 = vmatprep.subr.mxu0 0.0
    %335 = vmatpush1.msra.mxu0 0.0
    %336 = vmatprep.subr.mxu0 0.0
    %337 = vmatpush1.msra.mxu0 0.0
    %338 = vmatprep.subr.mxu0 0.0
    %339 = vmatpush1.msra.mxu0 0.0
    %340 = vmatprep.subr.mxu0 0.0
    %341 = vmatpush1.msra.mxu0 0.0
    %342 = vmatprep.subr.mxu0 0.0
    %343 = vmatpush1.msra.mxu0 0.0
    %344 = vmatprep.subr.mxu0 0.0
    %345 = vmatpush1.msra.mxu0 0.0
    %346 = vmatprep.subr.mxu0 0.0
    %347 = vmatpush1.msra.mxu0 0.0
    %348 = vmatprep.subr.mxu0 0.0
    %349 = vmatpush1.msra.mxu0 0.0
    %350 = vmatprep.subr.mxu0 0.0
    %351 = vmatpush1.msra.mxu0 0.0
    %352 = vmatprep.subr.mxu0 0.0
    %353 = vmatpush1.msra.mxu0 0.0
    %354 = vmatprep.subr.mxu0 0.0
    %355 = vmatpush1.msra.mxu0 0.0
    %356 = vmatprep.subr.mxu0 0.0
    %357 = vmatpush1.msra.mxu0 0.0
    %358 = vmatprep.subr.mxu0 0.0
    %359 = vmatpush1.msra.mxu0 0.0
    %360 = vmatprep.subr.mxu0 0.0
    %361 = vmatpush1.msra.mxu0 0.0
    %362 = vmatprep.subr.mxu0 0.0
    %363 = vmatpush1.msra.mxu0 0.0
    %364 = vmatprep.subr.mxu0 0.0
    %365 = vmatpush1.msra.mxu0 0.0
    %366 = vmatprep.subr.mxu0 0.0
    %367 = vmatpush1.msra.mxu0 0.0
    %368 = vmatprep.subr.mxu0 0.0
    %369 = vmatpush1.msra.mxu0 0.0
    %370 = vmatprep.subr.mxu0 0.0
    %371 = vmatpush1.msra.mxu0 0.0
    %372 = vmatprep.subr.mxu0 0.0
    %373 = vmatpush1.msra.mxu0 0.0
    %374 = vmatprep.subr.mxu0 0.0
    %375 = vmatpush1.msra.mxu0 0.0
    %376 = vmatprep.subr.mxu0 0.0
    %377 = vmatpush1.msra.mxu0 0.0
    %378 = vmatprep.mubr.f32.mxu0 0.0
    %379 = vmatmul.mubr.f32.gmra.mrb[0].mxu0 %v267
    %v380 = vpop.f32.mrb[0].mxu0
    %v381 = vadd.f32 0.0, %v380
    %v382 = vpop.f32.mrb[0].mxu0
    %383 = vmatprep.mubr.f32.mxu0 0.0
    %384 = vmatmul.mubr.f32.gmra.mrb[0].mxu0 %v270
    %v385 = vpop.f32.mrb[0].mxu0
    %v386 = vadd.f32 0.0, %v385
    %v387 = vpop.f32.mrb[0].mxu0
    %388 = vmatprep.mubr.f32.mxu0 0.0
    %389 = vmatmul.mubr.f32.gmra.mrb[0].mxu0 %v273
    %v390 = vpop.f32.mrb[0].mxu0
    %v391 = vadd.f32 0.0, %v390
    %v392 = vpop.f32.mrb[0].mxu0
    %393 = vmatprep.mubr.f32.mxu0 0.0
    %394 = vmatmul.mubr.f32.gmra.mrb[0].mxu0 %v276
    %v395 = vpop.f32.mrb[0].mxu0
    %v396 = vadd.f32 0.0, %v395
    %v397 = vpop.f32.mrb[0].mxu0
    %398 = vmatprep.mubr.f32.mxu0 0.0
    %399 = vmatmul.mubr.f32.gmra.mrb[0].mxu0 %v279
    %v400 = vpop.f32.mrb[0].mxu0
    %v401 = vadd.f32 0.0, %v400
    %v402 = vpop.f32.mrb[0].mxu0
    %403 = vmatprep.mubr.f32.mxu0 0.0
    %404 = vmatmul.mubr.f32.gmra.mrb[0].mxu0 %v282
    %v405 = vpop.f32.mrb[0].mxu0
    %v406 = vadd.f32 0.0, %v405
    %v407 = vpop.f32.mrb[0].mxu0
    %408 = vmatprep.mubr.f32.mxu0 0.0
    %409 = vmatmul.mubr.f32.gmra.mrb[0].mxu0 %v285
    %v410 = vpop.f32.mrb[0].mxu0
    %v411 = vadd.f32 0.0, %v410
    %v412 = vpop.f32.mrb[0].mxu0
    %413 = vmatprep.mubr.f32.mxu0 0.0
    %414 = vmatmul.mubr.f32.gmra.mrb[0].mxu0 %v288
    %v415 = vpop.f32.mrb[0].mxu0
    %v416 = vadd.f32 0.0, %v415
    %v417 = vpop.f32.mrb[0].mxu0
    %418 = vmatprep.mubr.f32.mxu0 0.0
    %419 = vmatmul.mubr.f32.gmra.mrb[0].mxu0 %v291
    %v420 = vpop.f32.mrb[0].mxu0
    %v421 = vadd.f32 0.0, %v420
    %v422 = vpop.f32.mrb[0].mxu0
    %423 = vmatprep.mubr.f32.mxu0 0.0
    %424 = vmatmul.mubr.f32.gmra.mrb[0].mxu0 %v294
    %v425 = vpop.f32.mrb[0].mxu0
    %v426 = vadd.f32 0.0, %v425
    %v427 = vpop.f32.mrb[0].mxu0
    %428 = vmatprep.mubr.f32.mxu0 0.0
    %429 = vmatmul.mubr.f32.gmra.mrb[0].mxu0 %v297
    %v430 = vpop.f32.mrb[0].mxu0
    %v431 = vadd.f32 0.0, %v430
    %v432 = vpop.f32.mrb[0].mxu0
    %433 = vmatprep.mubr.f32.mxu0 0.0
    %434 = vmatmul.mubr.f32.gmra.mrb[0].mxu0 %v300
    %v435 = vpop.f32.mrb[0].mxu0
    %v436 = vadd.f32 0.0, %v435
    %v437 = vpop.f32.mrb[0].mxu0
    %438 = vmatprep.mubr.f32.mxu0 0.0
    %439 = vmatmul.mubr.f32.gmra.mrb[0].mxu0 %v303
    %v440 = vpop.f32.mrb[0].mxu0
    %v441 = vadd.f32 0.0, %v440
    %v442 = vpop.f32.mrb[0].mxu0
    %443 = vmatprep.mubr.f32.mxu0 0.0
    %444 = vmatmul.mubr.f32.gmra.mrb[0].mxu0 %v306
    %v445 = vpop.f32.mrb[0].mxu0
    %v446 = vadd.f32 0.0, %v445
    %v447 = vpop.f32.mrb[0].mxu0
    %448 = vmatprep.mubr.f32.mxu0 0.0
    %449 = vmatmul.mubr.f32.gmra.mrb[0].mxu0 %v309
    %v450 = vpop.f32.mrb[0].mxu0
    %v451 = vadd.f32 0.0, %v450
    %v452 = vpop.f32.mrb[0].mxu0
    %453 = vmatprep.mubr.f32.mxu0 0.0
    %454 = vmatmul.mubr.f32.gmra.mrb[0].mxu0 %v312
    %v455 = vpop.f32.mrb[0].mxu0
    %v456 = vadd.f32 0.0, %v455
    %v457 = vpop.f32.mrb[0].mxu0
    %458 = vdwg.mxu0
    %v459 = vrot.slane %v232, 4
    %v460 = vadd.f32 %v232, %v459
    %v461 = vrot.slane %v460, 2
    %v462 = vadd.f32 %v460, %v461
    %v463 = vrot.slane %v462, 1
    %v464 = vadd.f32 %v462, %v463
    %v465 = vmul.f32 %v381, 0.01
    %v466 = vmul.f32 %v386, 0.01
    %v467 = vmul.f32 %v391, 0.01
    %v468 = vmul.f32 %v396, 0.01
    %v469 = vmul.f32 %v401, 0.01
    %v470 = vmul.f32 %v406, 0.01
    %v471 = vmul.f32 %v411, 0.01
    %v472 = vmul.f32 %v416, 0.01
    %v473 = vmul.f32 %v421, 0.01
    %v474 = vmul.f32 %v426, 0.01
    %v475 = vmul.f32 %v431, 0.01
    %v476 = vmul.f32 %v436, 0.01
    %v477 = vmul.f32 %v441, 0.01
    %v478 = vmul.f32 %v446, 0.01
    %v479 = vmul.f32 %v451, 0.01
    %v480 = vmul.f32 %v456, 0.01
    %v481 = vsub.f32 %v104, %v465
    %v482 = vsub.f32 %v105, %v466
    %v483 = vsub.f32 %v106, %v467
    %v484 = vsub.f32 %v107, %v468
    %v485 = vsub.f32 %v108, %v469
    %v486 = vsub.f32 %v109, %v470
    %v487 = vsub.f32 %v110, %v471
    %v488 = vsub.f32 %v111, %v472
    %v489 = vsub.f32 %v112, %v473
    %v490 = vsub.f32 %v113, %v474
    %v491 = vsub.f32 %v114, %v475
    %v492 = vsub.f32 %v115, %v476
    %v493 = vsub.f32 %v116, %v477
    %v494 = vsub.f32 %v117, %v478
    %v495 = vsub.f32 %v118, %v479
    %v496 = vsub.f32 %v119, %v480
    %v497 = vmul.f32 %v464, 0.01
    %v498 = vsub.f32 %v137, %v497
    %v499 = vmul.f32 %v121, 0.9
    %v500 = vmul.f32 %v122, 0.9
    %v501 = vmul.f32 %v123, 0.9
    %v502 = vmul.f32 %v124, 0.9
    %v503 = vmul.f32 %v125, 0.9
    %v504 = vmul.f32 %v126, 0.9
    %v505 = vmul.f32 %v127, 0.9
    %v506 = vmul.f32 %v128, 0.9
    %v507 = vmul.f32 %v129, 0.9
    %v508 = vmul.f32 %v130, 0.9
    %v509 = vmul.f32 %v131, 0.9
    %v510 = vmul.f32 %v132, 0.9
    %v511 = vmul.f32 %v133, 0.9
    %v512 = vmul.f32 %v134, 0.9
    %v513 = vmul.f32 %v135, 0.9
    %v514 = vmul.f32 %v136, 0.9
    %v515 = vmul.f32 %v481, 0.1
    %v516 = vmul.f32 %v482, 0.1
    %v517 = vmul.f32 %v483, 0.1
    %v518 = vmul.f32 %v484, 0.1
    %v519 = vmul.f32 %v485, 0.1
    %v520 = vmul.f32 %v486, 0.1
    %v521 = vmul.f32 %v487, 0.1
    %v522 = vmul.f32 %v488, 0.1
    %v523 = vmul.f32 %v489, 0.1
    %v524 = vmul.f32 %v490, 0.1
    %v525 = vmul.f32 %v491, 0.1
    %v526 = vmul.f32 %v492, 0.1
    %v527 = vmul.f32 %v493, 0.1
    %v528 = vmul.f32 %v494, 0.1
    %v529 = vmul.f32 %v495, 0.1
    %v530 = vmul.f32 %v496, 0.1
    %v531 = vadd.f32 %v499, %v515
    %v532 = vadd.f32 %v500, %v516
    %v533 = vadd.f32 %v501, %v517
    %v534 = vadd.f32 %v502, %v518
    %v535 = vadd.f32 %v503, %v519
    %v536 = vadd.f32 %v504, %v520
    %v537 = vadd.f32 %v505, %v521
    %v538 = vadd.f32 %v506, %v522
    %v539 = vadd.f32 %v507, %v523
    %v540 = vadd.f32 %v508, %v524
    %v541 = vadd.f32 %v509, %v525
    %v542 = vadd.f32 %v510, %v526
    %v543 = vadd.f32 %v511, %v527
    %v544 = vadd.f32 %v512, %v528
    %v545 = vadd.f32 %v513, %v529
    %v546 = vadd.f32 %v514, %v530
    %v547 = vmul.f32 %v137, 0.9
    %v548 = vmul.f32 %v498, 0.1
    %v550 = vrot.slane %v548, 7
    %v552 = vadd.f32 %v547, %v550
    %v553 = vlaneseq
    %v554 = vshrl.u32 %v553, 7
    %v555 = vsub.s32 0, %v554
    %v556 = vrot.slane %v498, %v555
    %557 = vmatprep.subr.mxu0 0.0
    %558 = vmatpush1.msra.mxu0 %v481
    %559 = vmatprep.subr.mxu0 0.0
    %560 = vmatpush1.msra.mxu0 %v482
    %561 = vmatprep.subr.mxu0 0.0
    %562 = vmatpush1.msra.mxu0 %v483
    %563 = vmatprep.subr.mxu0 0.0
    %564 = vmatpush1.msra.mxu0 %v484
    %565 = vmatprep.subr.mxu0 0.0
    %566 = vmatpush1.msra.mxu0 %v485
    %567 = vmatprep.subr.mxu0 0.0
    %568 = vmatpush1.msra.mxu0 %v486
    %569 = vmatprep.subr.mxu0 0.0
    %570 = vmatpush1.msra.mxu0 %v487
    %571 = vmatprep.subr.mxu0 0.0
    %572 = vmatpush1.msra.mxu0 %v488
    %573 = vmatprep.subr.mxu0 0.0
    %574 = vmatpush1.msra.mxu0 %v489
    %575 = vmatprep.subr.mxu0 0.0
    %576 = vmatpush1.msra.mxu0 %v490
    %577 = vmatprep.subr.mxu0 0.0
    %578 = vmatpush1.msra.mxu0 %v491
    %579 = vmatprep.subr.mxu0 0.0
    %580 = vmatpush1.msra.mxu0 %v492
    %581 = vmatprep.subr.mxu0 0.0
    %582 = vmatpush1.msra.mxu0 %v493
    %583 = vmatprep.subr.mxu0 0.0
    %584 = vmatpush1.msra.mxu0 %v494
    %585 = vmatprep.subr.mxu0 0.0
    %586 = vmatpush1.msra.mxu0 %v495
    %587 = vmatprep.subr.mxu0 0.0
    %588 = vmatpush1.msra.mxu0 %v496
    %589 = vmatprep.subr.mxu0 0.0
    %590 = vmatpush1.msra.mxu0 0.0
    %591 = vmatprep.subr.mxu0 0.0
    %592 = vmatpush1.msra.mxu0 0.0
    %593 = vmatprep.subr.mxu0 0.0
    %594 = vmatpush1.msra.mxu0 0.0
    %595 = vmatprep.subr.mxu0 0.0
    %596 = vmatpush1.msra.mxu0 0.0
    %597 = vmatprep.subr.mxu0 0.0
    %598 = vmatpush1.msra.mxu0 0.0
    %599 = vmatprep.subr.mxu0 0.0
    %600 = vmatpush1.msra.mxu0 0.0
    %601 = vmatprep.subr.mxu0 0.0
    %602 = vmatpush1.msra.mxu0 0.0
    %603 = vmatprep.subr.mxu0 0.0
    %604 = vmatpush1.msra.mxu0 0.0
    %605 = vmatprep.subr.mxu0 0.0
    %606 = vmatpush1.msra.mxu0 0.0
    %607 = vmatprep.subr.mxu0 0.0
    %608 = vmatpush1.msra.mxu0 0.0
    %609 = vmatprep.subr.mxu0 0.0
    %610 = vmatpush1.msra.mxu0 0.0
    %611 = vmatprep.subr.mxu0 0.0
    %612 = vmatpush1.msra.mxu0 0.0
    %613 = vmatprep.subr.mxu0 0.0
    %614 = vmatpush1.msra.mxu0 0.0
    %615 = vmatprep.subr.mxu0 0.0
    %616 = vmatpush1.msra.mxu0 0.0
    %617 = vmatprep.subr.mxu0 0.0
    %618 = vmatpush1.msra.mxu0 0.0
    %619 = vmatprep.subr.mxu0 0.0
    %620 = vmatpush1.msra.mxu0 0.0
    %621 = vmatprep.mubr.f32.mxu0 0.0
    %622 = vmatmul.mubr.f32.gmra.mrb[0].mxu0 %v103
    %v623 = vpop.f32.mrb[0].mxu0
    %v624 = vadd.f32 %v556, %v623
    %v625 = vpop.f32.mrb[0].mxu0
    %626 = vdwg.mxu0
    %627 = vst [vmem:[#allocation5] sm:$0xff] %v624
    %628 = vst [vmem:[#allocation6] sm:$0xff] %v481
    %629 = vst [vmem:[#allocation6 + $0x8] sm:$0xff] %v482
    %630 = vst [vmem:[#allocation6 + $0x10] sm:$0xff] %v483
    %631 = vst [vmem:[#allocation6 + $0x18] sm:$0xff] %v484
    %632 = vst [vmem:[#allocation6 + $0x20] sm:$0xff] %v485
    %633 = vst [vmem:[#allocation6 + $0x28] sm:$0xff] %v486
    %634 = vst [vmem:[#allocation6 + $0x30] sm:$0xff] %v487
    %635 = vst [vmem:[#allocation6 + $0x38] sm:$0xff] %v488
    %636 = vst [vmem:[#allocation6 + $0x40] sm:$0xff] %v489
    %637 = vst [vmem:[#allocation6 + $0x48] sm:$0xff] %v490
    %638 = vst [vmem:[#allocation6 + $0x50] sm:$0xff] %v491
    %639 = vst [vmem:[#allocation6 + $0x58] sm:$0xff] %v492
    %640 = vst [vmem:[#allocation6 + $0x60] sm:$0xff] %v493
    %641 = vst [vmem:[#allocation6 + $0x68] sm:$0xff] %v494
    %642 = vst [vmem:[#allocation6 + $0x70] sm:$0xff] %v495
    %643 = vst [vmem:[#allocation6 + $0x78] sm:$0xff] %v496
    %644 = vst [vmem:[%s120] sm:$0xff] %v531
    %645 = vst [vmem:[%s120 + $0x8] sm:$0xff] %v532
    %646 = vst [vmem:[%s120 + $0x10] sm:$0xff] %v533
    %647 = vst [vmem:[%s120 + $0x18] sm:$0xff] %v534
    %648 = vst [vmem:[%s120 + $0x20] sm:$0xff] %v535
    %649 = vst [vmem:[%s120 + $0x28] sm:$0xff] %v536
    %650 = vst [vmem:[%s120 + $0x30] sm:$0xff] %v537
    %651 = vst [vmem:[%s120 + $0x38] sm:$0xff] %v538
    %652 = vst [vmem:[%s120 + $0x40] sm:$0xff] %v539
    %653 = vst [vmem:[%s120 + $0x48] sm:$0xff] %v540
    %654 = vst [vmem:[%s120 + $0x50] sm:$0xff] %v541
    %655 = vst [vmem:[%s120 + $0x58] sm:$0xff] %v542
    %656 = vst [vmem:[%s120 + $0x60] sm:$0xff] %v543
    %657 = vst [vmem:[%s120 + $0x68] sm:$0xff] %v544
    %658 = vst [vmem:[%s120 + $0x70] sm:$0xff] %v545
    %659 = vst [vmem:[%s120 + $0x78] sm:$0xff] %v546
    %vm660 = vcmask 1040384
    %v661 = vsel %vm660, %v498, %v552
    %662 = vst [vmem:[%s5] sm:$0x3] %v661
    // Predicated region
    $region22: #{simple_cotta_adapt.1} parent=1 // pred_check
      _
    $region23: #{simple_cotta_adapt.1} parent=1 // pred_check_branch
      %664 = sbr.rel (0) target = $region25
    $region24: #{simple_cotta_adapt.1} parent=1 // pred_region
      %s666 = ssub.s32 128, 128
      %667 = vsyncadd [#allocation4], %s666
      %s669 = sshll.u32 [#allocation5], 4
      %s670 = int_to_ptr.vmem [resolvable:$true] %s669
      %672 = dma.vmem_to_hbm [thread:$0]  %s670, 128, %s3, [#allocation4]
    $region25: #{simple_cotta_adapt.1} parent=1 // pred_fallthru
      _
    // Predicated region
    $region26: #{simple_cotta_adapt.1} parent=1 // pred_check
      _
    $region27: #{simple_cotta_adapt.1} parent=1 // pred_check_branch
      %674 = sbr.rel (0) target = $region29
    $region28: #{simple_cotta_adapt.1} parent=1 // pred_region
      %s676 = ssub.s32 4096, 4096
      %677 = vsyncadd [#allocation7], %s676
      %s678 = sshll.u32 [#allocation6], 4
      %s679 = int_to_ptr.vmem [resolvable:$true] %s678
      %684 = dma.vmem_to_hbm [thread:$0]  %s679, 4096, %s4, [#allocation7], 128, 128, 8
    $region29: #{simple_cotta_adapt.1} parent=1 // pred_fallthru
      _
    // Predicated region
    $region30: #{simple_cotta_adapt.1} parent=1 // pred_check
      _
    $region31: #{simple_cotta_adapt.1} parent=1 // pred_check_branch
      %686 = sbr.rel (0) target = $region33
    $region32: #{simple_cotta_adapt.1} parent=1 // pred_region
      _
    $region33: #{simple_cotta_adapt.1} parent=1 // pred_fallthru
      _
    // Predicated region
    $region34: #{simple_cotta_adapt.1} parent=1 // pred_check
      _
    $region35: #{simple_cotta_adapt.1} parent=1 // pred_check_branch
      %688 = sbr.rel (0) target = $region37
    $region36: #{simple_cotta_adapt.1} parent=1 // pred_region
      %689 = dma.done [#allocation4], 128
    $region37: #{simple_cotta_adapt.1} parent=1 // pred_fallthru
      _
    // Predicated region
    $region38: #{simple_cotta_adapt.1} parent=1 // pred_check
      _
    $region39: #{simple_cotta_adapt.1} parent=1 // pred_check_branch
      %691 = sbr.rel (0) target = $region41
    $region40: #{simple_cotta_adapt.1} parent=1 // pred_region
      %692 = dma.done [#allocation7], 4096
    $region41: #{simple_cotta_adapt.1} parent=1 // pred_fallthru
      _
    // Predicated region
    $region42: #{simple_cotta_adapt.1} parent=1 // pred_check
      _
    $region43: #{simple_cotta_adapt.1} parent=1 // pred_check_branch
      %694 = sbr.rel (0) target = $region45
    $region44: #{simple_cotta_adapt.1} parent=1 // pred_region
      _
    $region45: #{simple_cotta_adapt.1} parent=1 // pred_fallthru
      _
    %695 = vsyncpa [#allocation3], 1
    %696 = vsyncpa [#allocation4], 1
    %697 = vsyncpa [#allocation7], 1

</llo_original>
